<compile_context>
chip_gen: v7x
topology: tpu7x:2x2x1
jax: 0.10.0
libtpu: 0.0.40
codegen_flags: <defaults>
</compile_context>

<pallas_src>
import functools

import jax
import jax.numpy as jnp
from jax.experimental import pallas as pl
from jax.experimental.pallas import tpu as pltpu


def _round_up(a, b):
    return (a + b - 1) // b * b


def _vmem_capacity_bytes():
    """Physical VMEM of the current TPU generation (conservative fallback)."""
    try:
        info_fn = getattr(pltpu, "get_tpu_info", None)
        if info_fn is not None:
            cap = int(getattr(info_fn(), "vmem_capacity_bytes", 0))
            if cap > 0:
                return cap
    except Exception:  # pragma: no cover - defensive
        pass
    return 64 * 1024 * 1024  # v7x per-TC VMEM (smallest across generations)


def _gem_kernel(p_ref, x_ref, o_ref, acc_ref, *, eps, hw, k, tile_l, true_l,
                mask_l):
    """One (row-tile, lane-tile) grid step of GeM pooling.

    x_ref:   (tile_r, tile_l) block of the packed (NC/k, k*HW) activation.
    acc_ref: f32 partial sums; (1, tile_r) when k == 1 else (tile_r, k).
    o_ref:   pooled output block; (1, tile_r) when k == 1 else (tile_r, k).
    p_ref:   (1,) f32 exponent in SMEM (runtime value, works under jax.jit).
    """
    j = pl.program_id(1)  # lane (reduction) tile index

    @pl.when(j == 0)
    def _init():
        acc_ref[...] = jnp.zeros_like(acc_ref)

    pv = p_ref[0]                              # runtime exponent
    x = x_ref[...]
    xc = jnp.maximum(x, eps)                   # clamp(min=eps), input dtype

    if mask_l:
        # Ragged last lane tile: zero out-of-range lanes so they contribute
        # nothing to the sums (0**p == 0 on every branch below).
        lane = jax.lax.broadcasted_iota(jnp.int32, (1, tile_l), 1) + j * tile_l
        xc = jnp.where(lane < true_l, xc, 0.0)

    def _accumulate(xp):
        if k == 1:
            # Exact f32 row sums over the lane axis (XLU).
            part = jnp.sum(xp.astype(jnp.float32), axis=-1)      # (tile_r,)
            acc_ref[...] += part[None, :]                        # (1, tile_r)
        else:
            # Per-channel (segmented) sums via a 0/1 indicator matmul on the
            # MXU.  Indicator entries are exactly representable in bf16.
            lane = (jax.lax.broadcasted_iota(jnp.int32, (tile_l, k), 0)
                    + j * tile_l)
            chan = jax.lax.broadcasted_iota(jnp.int32, (tile_l, k), 1)
            seg = jnp.where(lane // hw == chan, 1.0, 0.0).astype(jnp.bfloat16)
            if xp.dtype == jnp.float32:
                # hi/lo bf16 split -> ~f32-exact sums independent of the MXU's
                # default f32 matmul precision.
                hi = xp.astype(jnp.bfloat16)
                lo = (xp - hi.astype(jnp.float32)).astype(jnp.bfloat16)
                s = (jnp.dot(hi, seg, preferred_element_type=jnp.float32)
                     + jnp.dot(lo, seg, preferred_element_type=jnp.float32))
            else:
                # bf16 inputs: bf16 VALU math, f32 MXU accumulation.
                s = jnp.dot(xp, seg, preferred_element_type=jnp.float32)
            acc_ref[...] += s                                    # (tile_r, k)

    # ---- runtime exponent dispatch (keeps p==3 on the cheap VPU path even
    # ---- when p is a tracer under jax.jit) -------------------------------
    p_round = jnp.floor(pv + 0.5)
    p_is_3 = pv == 3.0
    p_is_int = jnp.logical_and(
        pv == p_round,
        jnp.logical_and(p_round >= 1.0, p_round <= 15.0))
    p_is_int_not3 = jnp.logical_and(p_is_int, jnp.logical_not(p_is_3))
    p_is_frac = jnp.logical_not(p_is_int)

    @pl.when(p_is_3)
    def _pow3():
        _accumulate(xc * xc * xc)

    @pl.when(p_is_int_not3)
    def _pow_small_int():
        p_i = p_round.astype(jnp.int32)
        res = jnp.ones_like(xc)
        base = xc
        for bit in range(4):                    # integer p in [1, 15]
            use = ((p_i >> bit) & 1) == 1
            res = jnp.where(use, res * base, res)
            if bit < 3:
                base = base * base
        _accumulate(res)

    @pl.when(p_is_frac)
    def _pow_frac():
        xf = xc.astype(jnp.float32)
        _accumulate(jnp.exp(pv * jnp.log(xf)))  # only path that is EUP-heavy

    @pl.when(j == pl.num_programs(1) - 1)
    def _finalize():
        mean = acc_ref[...] * (1.0 / hw)        # avg-pool over H*W
        y = jnp.power(mean, 1.0 / pv)           # tiny: one value per channel
        o_ref[...] = y.astype(o_ref.dtype)


def gem_forward(x, p, eps=1e-6, *, _budget_elems=None):
    """GeM pooling. x: (N, C, H, W); p: scalar / (1,) array -> (N, C, 1, 1)."""
    N, C, H, W = x.shape
    NC, HW = N * C, H * W
    itemsize = jnp.dtype(x.dtype).itemsize

    # ---- channel packing for lane-sparse spatial maps (e.g. 7x7 -> k=8) ----
    k = 1
    while HW * k < 256 and k < 32 and NC % (2 * k) == 0:
        k *= 2
    R, L = NC // k, k * HW
    x2 = x.reshape(R, L)                       # contiguous reshape: free

    # ---- generation-aware tile budget / VMEM limit -------------------------
    vmem_cap = _vmem_capacity_bytes()
    if _budget_elems is None:
        # ~8 MiB tiles on v7x (64 MiB VMEM), ~16 MiB on v5e/v6e (128 MiB).
        budget_elems = max((vmem_cap // 8) // itemsize, 128 * 1024)
    else:
        budget_elems = int(_budget_elems)      # test hook

    align = 128 if k == 1 else 8               # out-block lane / sublane align
    if L * align <= budget_elems:
        # Whole packed rows fit comfortably: tile only the row axis.
        num_l, tile_l = 1, L
        if R <= align:
            tile_r = R                         # tiny problem: single full tile
        else:
            t = max(align, (budget_elems // L) // align * align)
            t = min(t, 4096)
            # Aim for >=2 row tiles: DMA/compute overlap + v7x 2-TC sharding.
            t = min(t, _round_up(pl.cdiv(R, 2), align))
            tile_r = t
    else:
        # Very large H*W: also tile the reduction (lane) axis and accumulate.
        tile_r = min(R, align)
        max_tile_l = max(budget_elems // max(tile_r, 1), 128)
        num_l = pl.cdiv(L, max_tile_l)
        if num_l == 1:
            tile_l = L
        else:
            tile_l = _round_up(pl.cdiv(L, num_l), 128)
            num_l = pl.cdiv(L, tile_l)
    num_r = pl.cdiv(R, tile_r)
    mask_l = (num_l * tile_l != L)

    tile_bytes = tile_r * tile_l * itemsize
    vmem_limit = int(min(0.9 * vmem_cap,
                         max(32 * 1024 * 1024, 4 * tile_bytes + (2 << 20))))

    # ---- specs --------------------------------------------------------------
    p_arr = jnp.reshape(jnp.asarray(p, dtype=jnp.float32), (-1,))[:1]
    p_spec = pl.BlockSpec(memory_space=pltpu.MemorySpace.SMEM)
    x_spec = pl.BlockSpec((tile_r, tile_l), lambda i, j: (i, j))
    if k == 1:
        # Lane-dense pooled-output row (unmasked stores).
        out_shape = jax.ShapeDtypeStruct((1, NC), x.dtype)
        out_spec = pl.BlockSpec((1, tile_r), lambda i, j: (0, i))
        acc_alloc = pltpu.VMEM((1, tile_r), jnp.float32)
    else:
        # Packed path: (R, k) row-major == channel order.  Output bytes are
        # <= 1/HW of the input bytes, so the narrow store never binds.
        out_shape = jax.ShapeDtypeStruct((R, k), x.dtype)
        out_spec = pl.BlockSpec((tile_r, k), lambda i, j: (i, 0))
        acc_alloc = pltpu.VMEM((tile_r, k), jnp.float32)

    cost = pl.CostEstimate(
        flops=5 * NC * HW,
        transcendentals=2 * NC,
        bytes_accessed=NC * HW * itemsize + NC * itemsize,
    )

    out = pl.pallas_call(
        functools.partial(_gem_kernel, eps=eps, hw=HW, k=k, tile_l=tile_l,
                          true_l=L, mask_l=mask_l),
        out_shape=out_shape,
        grid=(num_r, num_l),
        in_specs=[p_spec, x_spec],
        out_specs=out_spec,
        scratch_shapes=[acc_alloc],
        compiler_params=pltpu.CompilerParams(
            dimension_semantics=("parallel", "arbitrary"),
            vmem_limit_bytes=vmem_limit,
        ),
        cost_estimate=cost,
    )(p_arr, x2)

    return out.reshape(N, C, 1, 1)


if __name__ == "__main__":
    key = jax.random.PRNGKey(0)
    k0, k1, k2, k3 = jax.random.split(key, 4)
    eps = 1e-6

    def ref_gem(x, pv):
        xc = jnp.maximum(x, eps)
        return jnp.power(
            jnp.mean(jnp.power(xc, pv), axis=(2, 3), keepdims=True), 1.0 / pv)

    p3 = jnp.ones((1,), jnp.float32) * 3.0      # nn.Parameter(ones(1) * 3)

    # 1) Default module config: p = 3, 16x16 spatial (unpacked, lane reduce).
    x = jax.random.uniform(k0, (2, 4, 16, 16), dtype=jnp.float32)
    y = jax.block_until_ready(gem_forward(x, p3, eps))
    assert y.shape == (2, 4, 1, 1)
    assert jnp.allclose(y, ref_gem(x, 3.0), rtol=2e-5, atol=1e-6), "p=3"

    # 2) Fractional p -> runtime exp/log branch.
    p25 = jnp.ones((1,), jnp.float32) * 2.5
    y = jax.block_until_ready(gem_forward(x, p25, eps))
    assert jnp.allclose(y, ref_gem(x, 2.5), rtol=2e-4, atol=1e-6), "p=2.5"

    # 3) Integer p != 3 -> runtime square-and-multiply branch.
    p4 = jnp.ones((1,), jnp.float32) * 4.0
    y = jax.block_until_ready(gem_forward(x, p4, eps))
    assert jnp.allclose(y, ref_gem(x, 4.0), rtol=5e-5, atol=1e-6), "p=4"

    # 4) Canonical GeM shape (7x7 spatial) -> packed path (k=8, MXU seg-sum).
    x7 = jax.random.uniform(k1, (2, 64, 7, 7), dtype=jnp.float32)
    y = jax.block_until_ready(gem_forward(x7, p3, eps))
    assert y.shape == (2, 64, 1, 1)
    assert jnp.allclose(y, ref_gem(x7, 3.0), rtol=1e-4, atol=1e-6), "packed"

    # 5) Odd channel count with 7x7 -> unpacked narrow-lane path.
    x5 = jax.random.uniform(k2, (3, 5, 7, 7), dtype=jnp.float32)
    y = jax.block_until_ready(gem_forward(x5, p3, eps))
    assert jnp.allclose(y, ref_gem(x5, 3.0), rtol=2e-5, atol=1e-6), "odd NC"

    # 6) Under jax.jit: p is a tracer, runtime p==3 fast path must be taken.
    y = jax.block_until_ready(jax.jit(gem_forward)(x, p3))
    assert jnp.allclose(y, ref_gem(x, 3.0), rtol=2e-5, atol=1e-6), "jit"

    # 7) Forced lane-axis (reduction) tiling + ragged-lane masking, k == 1.
    x15 = jax.random.uniform(k3, (3, 3, 15, 15), dtype=jnp.float32)
    y = jax.block_until_ready(gem_forward(x15, p3, eps, _budget_elems=1024))
    assert jnp.allclose(y, ref_gem(x15, 3.0), rtol=2e-5, atol=1e-6), "L-tiled"

    # 7b) Forced lane tiling on the packed path (k=2) with masking.
    x15b = jax.random.uniform(k3, (2, 4, 15, 15), dtype=jnp.float32)
    y = jax.block_until_ready(gem_forward(x15b, p3, eps, _budget_elems=1024))
    assert jnp.allclose(y, ref_gem(x15b, 3.0), rtol=1e-4, atol=1e-6), \
        "L-tiled packed"

    # 8) bf16 input: bf16 VALU math, f32 accumulation.
    xb32 = jax.random.uniform(k0, (2, 8, 7, 7), dtype=jnp.float32)
    xb = xb32.astype(jnp.bfloat16)
    y = jax.block_until_ready(gem_forward(xb, p3, eps))
    assert jnp.allclose(y.astype(jnp.float32),
                        ref_gem(xb.astype(jnp.float32), 3.0),
                        rtol=3e-2, atol=1e-3), "bf16"

    print("KERNEL_OK")
</pallas_src>

<mosaic_0001>
module attributes {stable_mosaic.version = 11 : i64} {
  func.func @_gem_kernel(%arg0: i32, %arg1: i32, %arg2: memref<1xf32, #tpu.memory_space<smem>>, %arg3: memref<8x256xf32, #tpu.memory_space<vmem>>, %arg4: memref<1x8xf32, #tpu.memory_space<vmem>>, %arg5: memref<1x8xf32, #tpu.memory_space<vmem>>) attributes {dimension_semantics = [#tpu.dimension_semantics<parallel>, #tpu.dimension_semantics<arbitrary>], iteration_bounds = array<i64: 1, 1>, scalar_prefetch = 0 : i64, scratch_operands = 1 : i64, tpu.core_type = #tpu.core_type<tc>, window_params = [{transform_indices = @transform_0, window_bounds = array<i64: 1>}, {transform_indices = @transform_1, window_bounds = array<i64: 8, 256>}, {transform_indices = @transform_2, window_bounds = array<i64: 1, 8>}]} {
    %c0_i32 = arith.constant 0 : i32
    %0 = arith.cmpi eq, %arg1, %c0_i32 : i32
    %1 = arith.extui %0 : i1 to i32
    %c0_i32_0 = arith.constant 0 : i32
    %2 = arith.cmpi ne, %1, %c0_i32_0 : i32
    scf.if %2 {
      %cst_13 = arith.constant 0.000000e+00 : f32
      %27 = vector.broadcast %cst_13 : f32 to vector<1x8xf32>
      %c0_14 = arith.constant 0 : index
      %c0_15 = arith.constant 0 : index
      %28 = vector.load %arg5[%c0_14, %c0_15] : memref<1x8xf32, #tpu.memory_space<vmem>>, vector<1x8xf32>
      tpu.vector_store %arg5[%c0_14, %c0_15], %27 {strides = array<i32>} : memref<1x8xf32, #tpu.memory_space<vmem>>, vector<1x8xf32>,
    } else {
    }
    %c0 = arith.constant 0 : index
    %3 = memref.load %arg2[%c0] : memref<1xf32, #tpu.memory_space<smem>>
    %c0_1 = arith.constant 0 : index
    %c0_2 = arith.constant 0 : index
    %4 = vector.load %arg3[%c0_1, %c0_2] : memref<8x256xf32, #tpu.memory_space<vmem>>, vector<8x256xf32>
    %cst = arith.constant 9.99999997E-7 : f32
    %5 = vector.broadcast %cst : f32 to vector<8x256xf32>
    %6 = arith.maximumf %4, %5 : vector<8x256xf32>
    %cst_3 = arith.constant 5.000000e-01 : f32
    %7 = arith.addf %3, %cst_3 : f32
    %8 = math.floor %7 : f32
    %cst_4 = arith.constant 3.000000e+00 : f32
    %9 = arith.cmpf oeq, %3, %cst_4 : f32
    %10 = arith.cmpf oeq, %3, %8 : f32
    %cst_5 = arith.constant 1.000000e+00 : f32
    %11 = arith.cmpf oge, %8, %cst_5 : f32
    %cst_6 = arith.constant 1.500000e+01 : f32
    %12 = arith.cmpf ole, %8, %cst_6 : f32
    %13 = arith.andi %11, %12 : i1
    %14 = arith.andi %10, %13 : i1
    %true = arith.constant true
    %15 = arith.xori %9, %true : i1
    %16 = arith.andi %14, %15 : i1
    %true_7 = arith.constant true
    %17 = arith.xori %14, %true_7 : i1
    %18 = arith.extui %9 : i1 to i32
    %c0_i32_8 = arith.constant 0 : i32
    %19 = arith.cmpi ne, %18, %c0_i32_8 : i32
    scf.if %19 {
      %27 = arith.mulf %6, %6 : vector<8x256xf32>
      %28 = arith.mulf %27, %6 : vector<8x256xf32>
      %cst_13 = arith.constant dense<0.000000e+00> : vector<8xf32>
      %29 = vector.multi_reduction <add>, %28, %cst_13 [1] : vector<8x256xf32> to vector<8xf32>
      %c0_14 = arith.constant 0 : index
      %c0_15 = arith.constant 0 : index
      %30 = vector.load %arg5[%c0_14, %c0_15] : memref<1x8xf32, #tpu.memory_space<vmem>>, vector<1x8xf32>
      %31 = vector.shape_cast %29 : vector<8xf32> to vector<1x8xf32>
      %32 = arith.addf %30, %31 : vector<1x8xf32>
      %c0_16 = arith.constant 0 : index
      %c0_17 = arith.constant 0 : index
      %33 = vector.load %arg5[%c0_16, %c0_17] : memref<1x8xf32, #tpu.memory_space<vmem>>, vector<1x8xf32>
      tpu.vector_store %arg5[%c0_16, %c0_17], %32 {strides = array<i32>} : memref<1x8xf32, #tpu.memory_space<vmem>>, vector<1x8xf32>,
    } else {
    }
    %20 = arith.extui %16 : i1 to i32
    %c0_i32_9 = arith.constant 0 : i32
    %21 = arith.cmpi ne, %20, %c0_i32_9 : i32
    scf.if %21 {
      %27 = arith.fptosi %8 : f32 to i32
      %cst_13 = arith.constant 1.000000e+00 : f32
      %28 = vector.broadcast %cst_13 : f32 to vector<8x256xf32>
      %c0_i32_14 = arith.constant 0 : i32
      %29 = arith.shrsi %27, %c0_i32_14 : i32
      %c1_i32 = arith.constant 1 : i32
      %30 = arith.andi %29, %c1_i32 : i32
      %c1_i32_15 = arith.constant 1 : i32
      %31 = arith.cmpi eq, %30, %c1_i32_15 : i32
      %32 = arith.mulf %28, %6 : vector<8x256xf32>
      %33 = arith.select %31, %32, %28 : vector<8x256xf32>
      %34 = arith.mulf %6, %6 : vector<8x256xf32>
      %c1_i32_16 = arith.constant 1 : i32
      %35 = arith.shrsi %27, %c1_i32_16 : i32
      %c1_i32_17 = arith.constant 1 : i32
      %36 = arith.andi %35, %c1_i32_17 : i32
      %c1_i32_18 = arith.constant 1 : i32
      %37 = arith.cmpi eq, %36, %c1_i32_18 : i32
      %38 = arith.mulf %33, %34 : vector<8x256xf32>
      %39 = arith.select %37, %38, %33 : vector<8x256xf32>
      %40 = arith.mulf %34, %34 : vector<8x256xf32>
      %c2_i32 = arith.constant 2 : i32
      %41 = arith.shrsi %27, %c2_i32 : i32
      %c1_i32_19 = arith.constant 1 : i32
      %42 = arith.andi %41, %c1_i32_19 : i32
      %c1_i32_20 = arith.constant 1 : i32
      %43 = arith.cmpi eq, %42, %c1_i32_20 : i32
      %44 = arith.mulf %39, %40 : vector<8x256xf32>
      %45 = arith.select %43, %44, %39 : vector<8x256xf32>
      %46 = arith.mulf %40, %40 : vector<8x256xf32>
      %c3_i32 = arith.constant 3 : i32
      %47 = arith.shrsi %27, %c3_i32 : i32
      %c1_i32_21 = arith.constant 1 : i32
      %48 = arith.andi %47, %c1_i32_21 : i32
      %c1_i32_22 = arith.constant 1 : i32
      %49 = arith.cmpi eq, %48, %c1_i32_22 : i32
      %50 = arith.mulf %45, %46 : vector<8x256xf32>
      %51 = arith.select %49, %50, %45 : vector<8x256xf32>
      %cst_23 = arith.constant dense<0.000000e+00> : vector<8xf32>
      %52 = vector.multi_reduction <add>, %51, %cst_23 [1] : vector<8x256xf32> to vector<8xf32>
      %c0_24 = arith.constant 0 : index
      %c0_25 = arith.constant 0 : index
      %53 = vector.load %arg5[%c0_24, %c0_25] : memref<1x8xf32, #tpu.memory_space<vmem>>, vector<1x8xf32>
      %54 = vector.shape_cast %52 : vector<8xf32> to vector<1x8xf32>
      %55 = arith.addf %53, %54 : vector<1x8xf32>
      %c0_26 = arith.constant 0 : index
      %c0_27 = arith.constant 0 : index
      %56 = vector.load %arg5[%c0_26, %c0_27] : memref<1x8xf32, #tpu.memory_space<vmem>>, vector<1x8xf32>
      tpu.vector_store %arg5[%c0_26, %c0_27], %55 {strides = array<i32>} : memref<1x8xf32, #tpu.memory_space<vmem>>, vector<1x8xf32>,
    } else {
    }
    %22 = arith.extui %17 : i1 to i32
    %c0_i32_10 = arith.constant 0 : i32
    %23 = arith.cmpi ne, %22, %c0_i32_10 : i32
    scf.if %23 {
      %27 = math.log %6 : vector<8x256xf32>
      %28 = vector.broadcast %3 : f32 to vector<8x256xf32>
      %29 = arith.mulf %28, %27 : vector<8x256xf32>
      %30 = math.exp %29 : vector<8x256xf32>
      %cst_13 = arith.constant dense<0.000000e+00> : vector<8xf32>
      %31 = vector.multi_reduction <add>, %30, %cst_13 [1] : vector<8x256xf32> to vector<8xf32>
      %c0_14 = arith.constant 0 : index
      %c0_15 = arith.constant 0 : index
      %32 = vector.load %arg5[%c0_14, %c0_15] : memref<1x8xf32, #tpu.memory_space<vmem>>, vector<1x8xf32>
      %33 = vector.shape_cast %31 : vector<8xf32> to vector<1x8xf32>
      %34 = arith.addf %32, %33 : vector<1x8xf32>
      %c0_16 = arith.constant 0 : index
      %c0_17 = arith.constant 0 : index
      %35 = vector.load %arg5[%c0_16, %c0_17] : memref<1x8xf32, #tpu.memory_space<vmem>>, vector<1x8xf32>
      tpu.vector_store %arg5[%c0_16, %c0_17], %34 {strides = array<i32>} : memref<1x8xf32, #tpu.memory_space<vmem>>, vector<1x8xf32>,
    } else {
    }
    %c0_i32_11 = arith.constant 0 : i32
    %24 = arith.cmpi eq, %arg1, %c0_i32_11 : i32
    %25 = arith.extui %24 : i1 to i32
    %c0_i32_12 = arith.constant 0 : i32
    %26 = arith.cmpi ne, %25, %c0_i32_12 : i32
    scf.if %26 {
      %c0_13 = arith.constant 0 : index
      %c0_14 = arith.constant 0 : index
      %27 = vector.load %arg5[%c0_13, %c0_14] : memref<1x8xf32, #tpu.memory_space<vmem>>, vector<1x8xf32>
      %cst_15 = arith.constant 3.906250e-03 : f32
      %28 = vector.broadcast %cst_15 : f32 to vector<1x8xf32>
      %29 = arith.mulf %27, %28 : vector<1x8xf32>
      %cst_16 = arith.constant 1.000000e+00 : f32
      %30 = arith.divf %cst_16, %3 : f32
      %31 = vector.broadcast %30 : f32 to vector<1x8xf32>
      %32 = math.powf %29, %31 : vector<1x8xf32>
      %c0_17 = arith.constant 0 : index
      %c0_18 = arith.constant 0 : index
      %33 = vector.load %arg4[%c0_17, %c0_18] : memref<1x8xf32, #tpu.memory_space<vmem>>, vector<1x8xf32>
      tpu.vector_store %arg4[%c0_17, %c0_18], %32 {strides = array<i32>} : memref<1x8xf32, #tpu.memory_space<vmem>>, vector<1x8xf32>,
    } else {
    }
    return
  }
  func.func @transform_0(%arg0: i32, %arg1: i32) -> i32 {
    %c0_i32 = arith.constant 0 : i32
    %c0_i32_0 = arith.constant 0 : i32
    return %c0_i32 : i32
  }
  func.func @transform_1(%arg0: i32, %arg1: i32) -> (i32, i32) {
    %c0_i32 = arith.constant 0 : i32
    return %arg0, %arg1 : i32, i32
  }
  func.func @transform_2(%arg0: i32, %arg1: i32) -> (i32, i32) {
    %c0_i32 = arith.constant 0 : i32
    %c0_i32_0 = arith.constant 0 : i32
    return %c0_i32, %arg0 : i32, i32
  }
}

</mosaic_0001>

<llo_original>
// kernel: tpu_custom_call.1
$region0: #{tpu_custom_call.1}
  #allocation0 [shape = 'u32[]', space=smem, size = 0x4, offset = 0x4, fixed_abs, tag = 'smem constant byte address 0x4 - core index']
  #allocation1 [shape = 'u32[144,128]{1,0:T(1,128)}', space=vmem, size = 0x12000, scoped, tag = 'internal scratch']
  #allocation2 [shape = 'f32[1,8]{1,0:T(1,128)}', space=vmem, size = 0x200, scoped, tag = 'scratch operand']
  #allocation3 [shape = 'f32[1]{0:T(128)S(6)}', space=smem, size = 0x200, scoped, tag = 'scoped memory for tpu_custom_call.1']
  %s0 = inlined_call_operand.<no memory space> [shape: f32[1], index: 0, kind: input, shape index: {}]
  %s1 = inlined_call_operand.hbm [shape: f32[8,256], index: 1, kind: input, shape index: {}]
  %s2 = inlined_call_operand.hbm [shape: f32[1,8], index: 2, kind: output, shape index: {}]
  %s3 = sld [smem:[#allocation0]]
  $region42: #{tpu_custom_call.1} parent=0
    _
  %s5 = ssub.s32 1, %s3
  %s6 = scalar_select 0, %s5, %s3
  %7 = sst [smem:[#allocation3]] %s0
  $region1: #{tpu_custom_call.1} parent=0
    #allocation4 [shape = 'u8[8192]{0}', space=vmem, size = 0x2000, scoped, tag = 'input window, operand 1, single buffered']
    #allocation5 [shape = 's32[1]{0}', space=sflag, size = 0x4, scoped, tag = 'scoped memory for tpu_custom_call.1']
    #allocation6 [shape = 's32[1]{0}', space=sflag, size = 0x4, scoped, tag = 'scoped memory for tpu_custom_call.1']
    #allocation7 [shape = 'u8[512]{0}', space=vmem, size = 0x400, scoped, tag = 'output window, operand 0, single buffered']
    %8 = vsyncpa [#allocation5], 0
    %9 = vsyncpa [#allocation6], 0
    // Predicated region
    $region2: #{tpu_custom_call.1} parent=1 // pred_check
      _
    $region3: #{tpu_custom_call.1} parent=1 // pred_check_branch
      %11 = sbr.rel (0) target = $region5
    $region4: #{tpu_custom_call.1} parent=1 // pred_region
      _
    $region5: #{tpu_custom_call.1} parent=1 // pred_fallthru
      _
    // Predicated region
    $region6: #{tpu_custom_call.1} parent=1 // pred_check
      _
    $region7: #{tpu_custom_call.1} parent=1 // pred_check_branch
      %13 = sbr.rel (0) target = $region9
    $region8: #{tpu_custom_call.1} parent=1 // pred_region
      %s15 = ssub.s32 256, 256
      %16 = vsyncadd [#allocation5], %s15
      %s18 = sshll.u32 [#allocation4], 4
      %s19 = int_to_ptr.vmem [resolvable:$true] %s18
      %21 = dma.hbm_to_vmem [thread:$0]  %s1, 256, %s19, [#allocation5]
    $region9: #{tpu_custom_call.1} parent=1 // pred_fallthru
      _
    // Predicated region
    $region10: #{tpu_custom_call.1} parent=1 // pred_check
      _
    $region11: #{tpu_custom_call.1} parent=1 // pred_check_branch
      %23 = sbr.rel (0) target = $region13
    $region12: #{tpu_custom_call.1} parent=1 // pred_region
      %24 = dma.done [#allocation5], 256
    $region13: #{tpu_custom_call.1} parent=1 // pred_fallthru
      _
    %p25 = scmp.eq.s32.totalorder 0, 0
    // Predicated region
    $region14: #{tpu_custom_call.1} parent=1 // pred_check
      %p26 = pneg %p25
    $region15: #{tpu_custom_call.1} parent=1 // pred_check_branch
      %28 = sbr.rel (%p26) target = $region17
    $region16: #{tpu_custom_call.1} parent=1 // pred_region
      %vm29 = vcmask 57344
      %30 = vst.msk [vmem:[#allocation2] sm:$0x1] %vm29, 0.0
    $region17: #{tpu_custom_call.1} parent=1 // pred_fallthru
      _
    %s31 = sld [smem:[#allocation3]]
    %v32 = vld [vmem:[#allocation4] sm:$0xff]
    %v33 = vld [vmem:[#allocation4 + $0x8] sm:$0xff]
    %v34 = vmax.f32 %v32, 1e-06
    %v35 = vmax.f32 %v33, 1e-06
    %s36 = sadd.f32 %s31, 0.5
    %s37 = sfloor.f32 %s36
    %p38 = scmp.eq.f32.partialorder %s31, 3.0
    %p39 = scmp.eq.f32.partialorder %s31, %s37
    %p40 = scmp.ge.f32.partialorder %s37, 1.0
    %p41 = scmp.le.f32.partialorder %s37, 15.0
    %p42 = pnand %p40, %p41
    %p43 = pneg %p42
    %p44 = pnand %p39, %p43
    %p45 = pneg %p44
    %p46 = pneg %p38
    %p47 = pnand %p45, %p46
    %p48 = pneg %p47
    %p49 = pneg %p45
    // Predicated region
    $region18: #{tpu_custom_call.1} parent=1 // pred_check
      %p50 = pneg %p38
    $region19: #{tpu_custom_call.1} parent=1 // pred_check_branch
      %52 = sbr.rel (%p50) target = $region21
    $region20: #{tpu_custom_call.1} parent=1 // pred_region
      %v53 = vmul.f32 %v34, %v34
      %v54 = vmul.f32 %v35, %v35
      %v55 = vmul.f32 %v53, %v34
      %v56 = vmul.f32 %v54, %v35
      %v57 = vadd.f32 %v55, %v56
      %58 = vadd.xlane.f32.xlu0 %v57
      %v59 = vpop.xlane.xlu0 %58
      %v60 = vld [vmem:[#allocation2] sm:$0x1]
      %v62 = vlaneseq
      %v63 = vshrl.u32 %v62, 7
      %v64 = vsub.s32 0, %v63
      %v65 = vrot.slane %v59, %v64
      %v66 = vlaneseq
      %v67 = vshrl.u32 %v66, 7
      %v68 = vsub.s32 1, %v67
      %v69 = vrot.slane %v59, %v68
      %v70 = vlaneseq
      %v71 = vshrl.u32 %v70, 7
      %v72 = vsub.s32 2, %v71
      %v73 = vrot.slane %v59, %v72
      %v74 = vlaneseq
      %v75 = vshrl.u32 %v74, 7
      %v76 = vsub.s32 3, %v75
      %v77 = vrot.slane %v59, %v76
      %v78 = vlaneseq
      %v79 = vshrl.u32 %v78, 7
      %v80 = vsub.s32 4, %v79
      %v81 = vrot.slane %v59, %v80
      %v82 = vlaneseq
      %v83 = vshrl.u32 %v82, 7
      %v84 = vsub.s32 5, %v83
      %v85 = vrot.slane %v59, %v84
      %v86 = vlaneseq
      %v87 = vshrl.u32 %v86, 7
      %v88 = vsub.s32 6, %v87
      %v89 = vrot.slane %v59, %v88
      %v90 = vlaneseq
      %v91 = vshrl.u32 %v90, 7
      %v92 = vsub.s32 7, %v91
      %v93 = vrot.slane %v59, %v92
      %v94 = vcombine.low %v65, %v69
      %v95 = vcombine.low %v73, %v77
      %v96 = vcombine.low %v81, %v85
      %v97 = vcombine.low %v89, %v93
      %v99 = vunpack.c.l.s4 1966171168
      %v100 = vunpack.c.0.s8 %v99
      %v101 = vlaneseq
      %v102 = vshrl.u32 %v101, 7
      %v103 = vsub.s32 %v100, %v102
      %v104 = vrot.slane %v94, %v103
      %v106 = vunpack.c.l.s4 1966171168
      %v107 = vunpack.c.0.s8 %v106
      %v108 = vlaneseq
      %v109 = vshrl.u32 %v108, 7
      %v110 = vsub.s32 %v107, %v109
      %v111 = vrot.slane %v95, %v110
      %v113 = vunpack.c.l.s4 1966171168
      %v114 = vunpack.c.0.s8 %v113
      %v115 = vlaneseq
      %v116 = vshrl.u32 %v115, 7
      %v117 = vsub.s32 %v114, %v116
      %v118 = vrot.slane %v96, %v117
      %v120 = vunpack.c.l.s4 1966171168
      %v121 = vunpack.c.0.s8 %v120
      %v122 = vlaneseq
      %v123 = vshrl.u32 %v122, 7
      %v124 = vsub.s32 %v121, %v123
      %v125 = vrot.slane %v97, %v124
      %v126 = vcombine.low %v104, %v111
      %v127 = vcombine.low %v118, %v125
      %v129 = vunpack.c.l.s4 1966171168
      %v130 = vunpack.c.0.s8 %v129
      %v131 = vlaneseq
      %v132 = vshrl.u32 %v131, 7
      %v133 = vsub.s32 %v130, %v132
      %v134 = vrot.slane %v126, %v133
      %v136 = vunpack.c.l.s4 1966171168
      %v137 = vunpack.c.0.s8 %v136
      %v138 = vlaneseq
      %v139 = vshrl.u32 %v138, 7
      %v140 = vsub.s32 %v137, %v139
      %v141 = vrot.slane %v127, %v140
      %v142 = vcombine.low %v134, %v141
      %143 = vset.pattern.permute.xlu0 0
      %144 = vperm.xlu0 %143, %v142
      %v145 = vpop.permute.xlu0 %144
      %v146 = vlaneseq
      %v147 = vand.u32 %v146, 127
      %v148 = vlaneseq
      %v149 = vshrl.u32 %v148, 7
      %v150 = vsub.s32 %v147, %v149
      %v151 = vrot.slane %v145, %v150
      %v153 = vunpack.c.l.s4 1966171168
      %v154 = vunpack.c.0.s8 %v153
      %v155 = vlaneseq
      %v156 = vshrl.u32 %v155, 7
      %v157 = vsub.s32 %v154, %v156
      %v158 = vrot.slane %v151, %v157
      %v160 = vunpack.c.l.s4 1966171168
      %v161 = vunpack.c.0.s8 %v160
      %v162 = vlaneseq
      %v163 = vshrl.u32 %v162, 7
      %v164 = vsub.s32 %v161, %v163
      %v165 = vrot.slane %v158, %v164
      %v167 = vadd.f32 %v60, %v165
      %vm168 = vcmask 57344
      %169 = vst.msk [vmem:[#allocation2] sm:$0x1] %vm168, %v167
    $region21: #{tpu_custom_call.1} parent=1 // pred_fallthru
      _
    // Predicated region
    $region22: #{tpu_custom_call.1} parent=1 // pred_check
      _
    $region23: #{tpu_custom_call.1} parent=1 // pred_check_branch
      %171 = sbr.rel (%p47) target = $region25
    $region24: #{tpu_custom_call.1} parent=1 // pred_region
      %s172 = scvt.f32.s32.to.zero.pseudo %s37
      %s173 = sand.u32 %s172, 1
      %p174 = scmp.eq.s32.totalorder %s173, 1
      %s175 = scalar_select %p174, 1, 0
      %v176 = vstv %s175
      %vm177 = vcmp.eq.s32.totalorder %v176, 1
      %v178 = vsel %vm177, %v34, 1.0
      %v179 = vsel %vm177, %v35, 1.0
      %v180 = vmul.f32 %v34, %v34
      %v181 = vmul.f32 %v35, %v35
      %s182 = sshra.s32 %s172, 1
      %s183 = sand.u32 %s182, 1
      %p184 = scmp.eq.s32.totalorder %s183, 1
      %v185 = vmul.f32 %v178, %v180
      %v186 = vmul.f32 %v179, %v181
      %s187 = scalar_select %p184, 1, 0
      %v188 = vstv %s187
      %vm189 = vcmp.eq.s32.totalorder %v188, 1
      %v190 = vsel %vm189, %v185, %v178
      %v191 = vsel %vm189, %v186, %v179
      %v192 = vmul.f32 %v180, %v180
      %v193 = vmul.f32 %v181, %v181
      %s194 = sshra.s32 %s172, 2
      %s195 = sand.u32 %s194, 1
      %p196 = scmp.eq.s32.totalorder %s195, 1
      %v197 = vmul.f32 %v190, %v192
      %v198 = vmul.f32 %v191, %v193
      %s199 = scalar_select %p196, 1, 0
      %v200 = vstv %s199
      %vm201 = vcmp.eq.s32.totalorder %v200, 1
      %v202 = vsel %vm201, %v197, %v190
      %v203 = vsel %vm201, %v198, %v191
      %v204 = vmul.f32 %v192, %v192
      %v205 = vmul.f32 %v193, %v193
      %s206 = sshra.s32 %s172, 3
      %s207 = sand.u32 %s206, 1
      %p208 = scmp.eq.s32.totalorder %s207, 1
      %v209 = vmul.f32 %v202, %v204
      %v210 = vmul.f32 %v203, %v205
      %s211 = scalar_select %p208, 1, 0
      %v212 = vstv %s211
      %vm213 = vcmp.eq.s32.totalorder %v212, 1
      %v214 = vsel %vm213, %v209, %v202
      %v215 = vsel %vm213, %v210, %v203
      %v216 = vadd.f32 %v214, %v215
      %217 = vadd.xlane.f32.xlu0 %v216
      %v218 = vpop.xlane.xlu0 %217
      %v219 = vld [vmem:[#allocation2] sm:$0x1]
      %v221 = vlaneseq
      %v222 = vshrl.u32 %v221, 7
      %v223 = vsub.s32 0, %v222
      %v224 = vrot.slane %v218, %v223
      %v225 = vlaneseq
      %v226 = vshrl.u32 %v225, 7
      %v227 = vsub.s32 1, %v226
      %v228 = vrot.slane %v218, %v227
      %v229 = vlaneseq
      %v230 = vshrl.u32 %v229, 7
      %v231 = vsub.s32 2, %v230
      %v232 = vrot.slane %v218, %v231
      %v233 = vlaneseq
      %v234 = vshrl.u32 %v233, 7
      %v235 = vsub.s32 3, %v234
      %v236 = vrot.slane %v218, %v235
      %v237 = vlaneseq
      %v238 = vshrl.u32 %v237, 7
      %v239 = vsub.s32 4, %v238
      %v240 = vrot.slane %v218, %v239
      %v241 = vlaneseq
      %v242 = vshrl.u32 %v241, 7
      %v243 = vsub.s32 5, %v242
      %v244 = vrot.slane %v218, %v243
      %v245 = vlaneseq
      %v246 = vshrl.u32 %v245, 7
      %v247 = vsub.s32 6, %v246
      %v248 = vrot.slane %v218, %v247
      %v249 = vlaneseq
      %v250 = vshrl.u32 %v249, 7
      %v251 = vsub.s32 7, %v250
      %v252 = vrot.slane %v218, %v251
      %v253 = vcombine.low %v224, %v228
      %v254 = vcombine.low %v232, %v236
      %v255 = vcombine.low %v240, %v244
      %v256 = vcombine.low %v248, %v252
      %v258 = vunpack.c.l.s4 1966171168
      %v259 = vunpack.c.0.s8 %v258
      %v260 = vlaneseq
      %v261 = vshrl.u32 %v260, 7
      %v262 = vsub.s32 %v259, %v261
      %v263 = vrot.slane %v253, %v262
      %v265 = vunpack.c.l.s4 1966171168
      %v266 = vunpack.c.0.s8 %v265
      %v267 = vlaneseq
      %v268 = vshrl.u32 %v267, 7
      %v269 = vsub.s32 %v266, %v268
      %v270 = vrot.slane %v254, %v269
      %v272 = vunpack.c.l.s4 1966171168
      %v273 = vunpack.c.0.s8 %v272
      %v274 = vlaneseq
      %v275 = vshrl.u32 %v274, 7
      %v276 = vsub.s32 %v273, %v275
      %v277 = vrot.slane %v255, %v276
      %v279 = vunpack.c.l.s4 1966171168
      %v280 = vunpack.c.0.s8 %v279
      %v281 = vlaneseq
      %v282 = vshrl.u32 %v281, 7
      %v283 = vsub.s32 %v280, %v282
      %v284 = vrot.slane %v256, %v283
      %v285 = vcombine.low %v263, %v270
      %v286 = vcombine.low %v277, %v284
      %v288 = vunpack.c.l.s4 1966171168
      %v289 = vunpack.c.0.s8 %v288
      %v290 = vlaneseq
      %v291 = vshrl.u32 %v290, 7
      %v292 = vsub.s32 %v289, %v291
      %v293 = vrot.slane %v285, %v292
      %v295 = vunpack.c.l.s4 1966171168
      %v296 = vunpack.c.0.s8 %v295
      %v297 = vlaneseq
      %v298 = vshrl.u32 %v297, 7
      %v299 = vsub.s32 %v296, %v298
      %v300 = vrot.slane %v286, %v299
      %v301 = vcombine.low %v293, %v300
      %302 = vset.pattern.permute.xlu0 0
      %303 = vperm.xlu0 %302, %v301
      %v304 = vpop.permute.xlu0 %303
      %v305 = vlaneseq
      %v306 = vand.u32 %v305, 127
      %v307 = vlaneseq
      %v308 = vshrl.u32 %v307, 7
      %v309 = vsub.s32 %v306, %v308
      %v310 = vrot.slane %v304, %v309
      %v312 = vunpack.c.l.s4 1966171168
      %v313 = vunpack.c.0.s8 %v312
      %v314 = vlaneseq
      %v315 = vshrl.u32 %v314, 7
      %v316 = vsub.s32 %v313, %v315
      %v317 = vrot.slane %v310, %v316
      %v319 = vunpack.c.l.s4 1966171168
      %v320 = vunpack.c.0.s8 %v319
      %v321 = vlaneseq
      %v322 = vshrl.u32 %v321, 7
      %v323 = vsub.s32 %v320, %v322
      %v324 = vrot.slane %v317, %v323
      %v326 = vadd.f32 %v219, %v324
      %vm327 = vcmask 57344
      %328 = vst.msk [vmem:[#allocation2] sm:$0x1] %vm327, %v326
    $region25: #{tpu_custom_call.1} parent=1 // pred_fallthru
      _
    // Predicated region
    $region26: #{tpu_custom_call.1} parent=1 // pred_check
      _
    $region27: #{tpu_custom_call.1} parent=1 // pred_check_branch
      %330 = sbr.rel (%p45) target = $region29
    $region28: #{tpu_custom_call.1} parent=1 // pred_region
      %v331 = vlog2.pop %v34
      %v332 = vmul.f32 %v331, 0.6931472
      %v333 = vlog2.pop %v35
      %v334 = vmul.f32 %v333, 0.6931472
      %v335 = vstv %s31
      %v336 = vmul.f32 %v335, %v332
      %v337 = vmul.f32 %v335, %v334
      %v338 = vmul.f32 %v336, 1.442695
      %v339 = vpow.pop %v338
      %v340 = vmul.f32 %v337, 1.442695
      %v341 = vpow.pop %v340
      %v342 = vadd.f32 %v339, %v341
      %343 = vadd.xlane.f32.xlu0 %v342
      %v344 = vpop.xlane.xlu0 %343
      %v345 = vld [vmem:[#allocation2] sm:$0x1]
      %v347 = vlaneseq
      %v348 = vshrl.u32 %v347, 7
      %v349 = vsub.s32 0, %v348
      %v350 = vrot.slane %v344, %v349
      %v351 = vlaneseq
      %v352 = vshrl.u32 %v351, 7
      %v353 = vsub.s32 1, %v352
      %v354 = vrot.slane %v344, %v353
      %v355 = vlaneseq
      %v356 = vshrl.u32 %v355, 7
      %v357 = vsub.s32 2, %v356
      %v358 = vrot.slane %v344, %v357
      %v359 = vlaneseq
      %v360 = vshrl.u32 %v359, 7
      %v361 = vsub.s32 3, %v360
      %v362 = vrot.slane %v344, %v361
      %v363 = vlaneseq
      %v364 = vshrl.u32 %v363, 7
      %v365 = vsub.s32 4, %v364
      %v366 = vrot.slane %v344, %v365
      %v367 = vlaneseq
      %v368 = vshrl.u32 %v367, 7
      %v369 = vsub.s32 5, %v368
      %v370 = vrot.slane %v344, %v369
      %v371 = vlaneseq
      %v372 = vshrl.u32 %v371, 7
      %v373 = vsub.s32 6, %v372
      %v374 = vrot.slane %v344, %v373
      %v375 = vlaneseq
      %v376 = vshrl.u32 %v375, 7
      %v377 = vsub.s32 7, %v376
      %v378 = vrot.slane %v344, %v377
      %v379 = vcombine.low %v350, %v354
      %v380 = vcombine.low %v358, %v362
      %v381 = vcombine.low %v366, %v370
      %v382 = vcombine.low %v374, %v378
      %v384 = vunpack.c.l.s4 1966171168
      %v385 = vunpack.c.0.s8 %v384
      %v386 = vlaneseq
      %v387 = vshrl.u32 %v386, 7
      %v388 = vsub.s32 %v385, %v387
      %v389 = vrot.slane %v379, %v388
      %v391 = vunpack.c.l.s4 1966171168
      %v392 = vunpack.c.0.s8 %v391
      %v393 = vlaneseq
      %v394 = vshrl.u32 %v393, 7
      %v395 = vsub.s32 %v392, %v394
      %v396 = vrot.slane %v380, %v395
      %v398 = vunpack.c.l.s4 1966171168
      %v399 = vunpack.c.0.s8 %v398
      %v400 = vlaneseq
      %v401 = vshrl.u32 %v400, 7
      %v402 = vsub.s32 %v399, %v401
      %v403 = vrot.slane %v381, %v402
      %v405 = vunpack.c.l.s4 1966171168
      %v406 = vunpack.c.0.s8 %v405
      %v407 = vlaneseq
      %v408 = vshrl.u32 %v407, 7
      %v409 = vsub.s32 %v406, %v408
      %v410 = vrot.slane %v382, %v409
      %v411 = vcombine.low %v389, %v396
      %v412 = vcombine.low %v403, %v410
      %v414 = vunpack.c.l.s4 1966171168
      %v415 = vunpack.c.0.s8 %v414
      %v416 = vlaneseq
      %v417 = vshrl.u32 %v416, 7
      %v418 = vsub.s32 %v415, %v417
      %v419 = vrot.slane %v411, %v418
      %v421 = vunpack.c.l.s4 1966171168
      %v422 = vunpack.c.0.s8 %v421
      %v423 = vlaneseq
      %v424 = vshrl.u32 %v423, 7
      %v425 = vsub.s32 %v422, %v424
      %v426 = vrot.slane %v412, %v425
      %v427 = vcombine.low %v419, %v426
      %428 = vset.pattern.permute.xlu0 0
      %429 = vperm.xlu0 %428, %v427
      %v430 = vpop.permute.xlu0 %429
      %v431 = vlaneseq
      %v432 = vand.u32 %v431, 127
      %v433 = vlaneseq
      %v434 = vshrl.u32 %v433, 7
      %v435 = vsub.s32 %v432, %v434
      %v436 = vrot.slane %v430, %v435
      %v438 = vunpack.c.l.s4 1966171168
      %v439 = vunpack.c.0.s8 %v438
      %v440 = vlaneseq
      %v441 = vshrl.u32 %v440, 7
      %v442 = vsub.s32 %v439, %v441
      %v443 = vrot.slane %v436, %v442
      %v445 = vunpack.c.l.s4 1966171168
      %v446 = vunpack.c.0.s8 %v445
      %v447 = vlaneseq
      %v448 = vshrl.u32 %v447, 7
      %v449 = vsub.s32 %v446, %v448
      %v450 = vrot.slane %v443, %v449
      %v452 = vadd.f32 %v345, %v450
      %vm453 = vcmask 57344
      %454 = vst.msk [vmem:[#allocation2] sm:$0x1] %vm453, %v452
    $region29: #{tpu_custom_call.1} parent=1 // pred_fallthru
      _
    // Predicated region
    $region30: #{tpu_custom_call.1} parent=1 // pred_check
      %p455 = pneg %p25
    $region31: #{tpu_custom_call.1} parent=1 // pred_check_branch
      %457 = sbr.rel (%p455) target = $region33
    $region32: #{tpu_custom_call.1} parent=1 // pred_region
      %v458 = vld [vmem:[#allocation2] sm:$0x1]
      %v459 = vmul.f32 %v458, 0.00390625
      %v460 = vstv %s31
      %v461 = vrcp.pop %v460
      %s462 = vtos %v461
      %v463 = vstv %s462
      %v464 = vpow.f32 %v459, %v463
      %vm465 = vcmask 57344
      %466 = vst.msk [vmem:[#allocation7] sm:$0x1] %vm465, %v464
    $region33: #{tpu_custom_call.1} parent=1 // pred_fallthru
      _
    // Predicated region
    $region34: #{tpu_custom_call.1} parent=1 // pred_check
      _
    $region35: #{tpu_custom_call.1} parent=1 // pred_check_branch
      %468 = sbr.rel (0) target = $region37
    $region36: #{tpu_custom_call.1} parent=1 // pred_region
      %s470 = ssub.s32 16, 16
      %471 = vsyncadd [#allocation6], %s470
      %s473 = sshll.u32 [#allocation7], 4
      %s474 = int_to_ptr.vmem [resolvable:$true] %s473
      %476 = dma.vmem_to_hbm [thread:$0]  %s474, 16, %s2, [#allocation6]
    $region37: #{tpu_custom_call.1} parent=1 // pred_fallthru
      _
    // Predicated region
    $region38: #{tpu_custom_call.1} parent=1 // pred_check
      _
    $region39: #{tpu_custom_call.1} parent=1 // pred_check_branch
      %478 = sbr.rel (0) target = $region41
    $region40: #{tpu_custom_call.1} parent=1 // pred_region
      %479 = dma.done [#allocation6], 16
    $region41: #{tpu_custom_call.1} parent=1 // pred_fallthru
      _
    %480 = vsyncpa [#allocation5], 1
    %481 = vsyncpa [#allocation6], 1

</llo_original>
